<compile_context>
chip_gen: v7x
topology: tpu7x:2x2x1
jax: 0.10.0
libtpu: 0.0.40
codegen_flags: <defaults>
</compile_context>

<pallas_src>
import jax
import jax.numpy as jnp
from jax.experimental import pallas as pl
from jax.experimental.pallas import tpu as pltpu

LANES = 128            # vreg lane width
MAX_TILE_ROWS = 4096   # 2 MiB f32/block; 8 MiB double-buffered in+out (fits v5e/v6e/v7x defaults)
TINY_N = 4096          # below this, skip Pallas entirely (dispatch overhead dominates)


def _round_up(x, m):
    return ((x + m - 1) // m) * m


def _affine_kernel(wb_ref, x_ref, o_ref):
    # wb_ref: (2,) f32 in SMEM  -> [w, b] scalars
    # x_ref / o_ref: (tile_rows, 128) f32 lane-dense blocks in VMEM
    w = wb_ref[0]
    b = wb_ref[1]
    o_ref[...] = x_ref[...] * w + b  # pure VPU elementwise affine


def linear_regression_forward(x, weight, bias):
    """x: (N, 1) f32, weight: (1, 1) f32, bias: (1,) f32 -> (N, 1) f32."""
    n, in_f = x.shape
    out_f = weight.shape[0]
    assert in_f == 1 and out_f == 1, "kernel specialized for nn.Linear(1, 1)"

    w = weight.reshape(()).astype(jnp.float32)
    b = bias.reshape(()).astype(jnp.float32)

    # --- tiny-batch fast path: a single fused XLA elementwise op -----------
    if n <= TINY_N:
        return (x.astype(jnp.float32) * w + b).reshape(n, out_f)

    # Scalars for SMEM: [w, b]
    wb = jnp.stack([w, b])

    # --- layout plumbing (plain JAX, outside the kernel) -------------------
    rows = pl.cdiv(n, LANES)          # lane-dense rows needed
    rows8 = _round_up(rows, 8)        # sublane rule
    # Balanced tiling: pick the grid size first, then split rows evenly.
    num_tiles = pl.cdiv(rows8, MAX_TILE_ROWS)
    # v7x has 2 TensorCores: make sure "parallel" has >= 2 programs to shard.
    if num_tiles < 2 and rows8 > 8:
        num_tiles = 2
    tile_rows = _round_up(pl.cdiv(rows8, num_tiles), 8)
    rows_padded = tile_rows * num_tiles
    padded = rows_padded * LANES

    x_flat = jnp.ravel(x).astype(jnp.float32)
    aligned = (padded == n)
    if aligned:
        # Free contiguous view; no pad pass, no output slice pass.
        x_slab = x_flat.reshape(rows_padded, LANES)
    else:
        x_slab = jnp.pad(x_flat, (0, padded - n)).reshape(rows_padded, LANES)

    grid = (num_tiles,)

    y_slab = pl.pallas_call(
        _affine_kernel,
        out_shape=jax.ShapeDtypeStruct((rows_padded, LANES), jnp.float32),
        grid=grid,
        in_specs=[
            # w, b as scalars in SMEM (no per-step VMEM DMA for params)
            pl.BlockSpec(memory_space=pltpu.MemorySpace.SMEM),
            # lane-dense batch tiles
            pl.BlockSpec((tile_rows, LANES), lambda i: (i, 0)),
        ],
        out_specs=pl.BlockSpec((tile_rows, LANES), lambda i: (i, 0)),
        compiler_params=pltpu.CompilerParams(
            dimension_semantics=("parallel",),
        ),
    )(wb, x_slab)

    if aligned:
        return y_slab.reshape(n, out_f)
    # Drop padding rows and restore (N, 1) layout.
    return y_slab.reshape(padded)[:n].reshape(n, out_f)


if __name__ == "__main__":
    key = jax.random.PRNGKey(0)
    kx, kw, kb, kx2, kx3, kx4 = jax.random.split(key, 6)

    # Deterministic parameter init (nn.Linear(1, 1): W (1,1), b (1,))
    weight = jax.random.uniform(kw, (1, 1), jnp.float32, minval=-1.0, maxval=1.0)
    bias = jax.random.uniform(kb, (1,), jnp.float32, minval=-1.0, maxval=1.0)

    def check(xin):
        y = jax.block_until_ready(linear_regression_forward(xin, weight, bias))
        y_ref = xin @ weight.T + bias
        assert y.shape == y_ref.shape
        assert jnp.allclose(y, y_ref, atol=1e-6), f"mismatch vs reference (N={xin.shape[0]})"

    # Small batches -> tiny-N fused-XLA fast path.
    check(jax.random.normal(kx, (8, 1), jnp.float32))
    check(jax.random.normal(kx2, (300, 1), jnp.float32))

    # Aligned Pallas path: N = 65536 -> (512,128) slab, 2 balanced tiles, no pad/slice.
    check(jax.random.normal(kx3, (65536, 1), jnp.float32))

    # Unaligned Pallas path: exercises balanced tiling + pad/slice.
    check(jax.random.normal(kx4, (70000, 1), jnp.float32))

    print("KERNEL_OK")
</pallas_src>

<mosaic_0001>
module attributes {stable_mosaic.version = 11 : i64} {
  func.func @_affine_kernel(%arg0: i32, %arg1: memref<2xf32, #tpu.memory_space<smem>>, %arg2: memref<256x128xf32, #tpu.memory_space<vmem>>, %arg3: memref<256x128xf32, #tpu.memory_space<vmem>>) attributes {dimension_semantics = [#tpu.dimension_semantics<parallel>], iteration_bounds = array<i64: 2>, scalar_prefetch = 0 : i64, scratch_operands = 0 : i64, tpu.core_type = #tpu.core_type<tc>, window_params = [{transform_indices = @transform_0, window_bounds = array<i64: 2>}, {transform_indices = @transform_1, window_bounds = array<i64: 256, 128>}, {transform_indices = @transform_2, window_bounds = array<i64: 256, 128>}]} {
    %c0 = arith.constant 0 : index
    %0 = memref.load %arg1[%c0] : memref<2xf32, #tpu.memory_space<smem>>
    %c1 = arith.constant 1 : index
    %1 = memref.load %arg1[%c1] : memref<2xf32, #tpu.memory_space<smem>>
    %c0_0 = arith.constant 0 : index
    %c0_1 = arith.constant 0 : index
    %2 = vector.load %arg2[%c0_0, %c0_1] : memref<256x128xf32, #tpu.memory_space<vmem>>, vector<256x128xf32>
    %3 = vector.broadcast %0 : f32 to vector<256x128xf32>
    %4 = arith.mulf %2, %3 : vector<256x128xf32>
    %5 = vector.broadcast %1 : f32 to vector<256x128xf32>
    %6 = arith.addf %4, %5 : vector<256x128xf32>
    %c0_2 = arith.constant 0 : index
    %c0_3 = arith.constant 0 : index
    %7 = vector.load %arg3[%c0_2, %c0_3] : memref<256x128xf32, #tpu.memory_space<vmem>>, vector<256x128xf32>
    tpu.vector_store %arg3[%c0_2, %c0_3], %6 {strides = array<i32>} : memref<256x128xf32, #tpu.memory_space<vmem>>, vector<256x128xf32>,
    return
  }
  func.func @transform_0(%arg0: i32) -> i32 {
    %c0_i32 = arith.constant 0 : i32
    %c0_i32_0 = arith.constant 0 : i32
    return %c0_i32 : i32
  }
  func.func @transform_1(%arg0: i32) -> (i32, i32) {
    %c0_i32 = arith.constant 0 : i32
    %c0_i32_0 = arith.constant 0 : i32
    return %arg0, %c0_i32 : i32, i32
  }
  func.func @transform_2(%arg0: i32) -> (i32, i32) {
    %c0_i32 = arith.constant 0 : i32
    %c0_i32_0 = arith.constant 0 : i32
    return %arg0, %c0_i32 : i32, i32
  }
}

</mosaic_0001>

<llo_original>
// kernel: tpu_custom_call.1
$region0: #{tpu_custom_call.1}
  #allocation0 [shape = 'u32[]', space=smem, size = 0x4, offset = 0x4, fixed_abs, tag = 'smem constant byte address 0x4 - core index']
  #allocation1 [shape = 'u32[144,128]{1,0:T(1,128)}', space=vmem, size = 0x12000, scoped, tag = 'internal scratch']
  %s0 = inlined_call_operand.hbm [shape: f32[2], index: 0, kind: input, shape index: {}]
  %s1 = inlined_call_operand.hbm [shape: f32[512,128], index: 1, kind: input, shape index: {}]
  %s2 = inlined_call_operand.hbm [shape: f32[512,128], index: 2, kind: output, shape index: {}]
  %s3 = sld [smem:[#allocation0]]
  $region49: #{tpu_custom_call.1} parent=0
    _
  %s5 = ssub.s32 1, %s3
  %s6 = scalar_select 0, %s5, %s3
  $region1: #{tpu_custom_call.1} parent=0
    #allocation2 [shape = 'u8[512]{0}', space=smem, size = 0x200, scoped, tag = 'input window, operand 0, single buffered']
    #allocation3 [shape = 's32[2]{0}', space=sflag, size = 0x8, scoped, tag = 'scoped memory for tpu_custom_call.1']
    #allocation4 [shape = 's32[2]{0}', space=sflag, size = 0x8, scoped, tag = 'scoped memory for tpu_custom_call.1']
    #allocation5 [shape = 's32[2]{0}', space=sflag, size = 0x8, scoped, tag = 'scoped memory for tpu_custom_call.1']
    #allocation6 [shape = 'u8[262144]{0}', space=vmem, size = 0x40000, scoped, tag = 'input window, operand 1']
    #allocation7 [shape = 'u8[262144]{0}', space=vmem, size = 0x40000, scoped, tag = 'output window, operand 0']
    %7 = vsyncpa [#allocation5], 0
    %8 = vsyncpa [#allocation3], 0
    %s9 = scalar_lea.sflag [#allocation3], 1
    %10 = vsyncpa %s9, 0
    %11 = vsyncpa [#allocation4], 0
    %s12 = scalar_lea.sflag [#allocation4], 1
    %13 = vsyncpa %s12, 0
    loop: start=0, step=1, limit=4
    $region2: #{tpu_custom_call.1} parent=1 // loop_pre_header
      _
    $region3: #{tpu_custom_call.1} parent=1 // loop_header
      %s15 = sphi 0, %s19
      %p16 = scmp.ge.s32.totalorder %s15, 4
      %s23 = sphi 0, %s23
      %s25 = sphi 0, %s23
      %s26 = sphi 0, %s25
      %s40 = sphi 0, %s26
      %s46 = sphi 0, %s48
      %s49 = sphi 0, %s46
      %s50 = sphi 0, %s49
      %s66 = sphi 0, %s50
      %s72 = sphi 0, %s74
      %s75 = sphi 0, %s72
      %s76 = sphi 0, %s75
      %s92 = sphi 0, %s76
    $region4: #{tpu_custom_call.1} parent=1 // loop_header_branch
      %18 = sbr.rel (%p16) target = $region8
    $region5: #{tpu_custom_call.1} parent=1 // loop_body
      %s20 = ssub.s32 %s15, 1
      %s21 = ssub.s32 %s15, 2
      %s22 = sadd.s32 %s15, 1
      %s24 = sadd.s32 %s23, 1
      %p27 = scmp.eq.s32.totalorder %s15, 1
      %p28 = scmp.ne.s32.totalorder %s23, %s25
      %p29 = scmp.eq.s32.totalorder %s15, 0
      %p30 = por %p28, %p29
      %p31 = scmp.ne.s32.totalorder %s23, %s25
      %p32 = scmp.eq.s32.totalorder %s20, 1
      %p33 = por %p31, %p32
      %p34 = scmp.ne.s32.totalorder %s25, %s26
      %p35 = scmp.eq.s32.totalorder %s20, 0
      %p36 = por %p34, %p35
      %p37 = scmp.ne.s32.totalorder %s25, %s26
      %p38 = scmp.eq.s32.totalorder %s21, 1
      %p39 = por %p37, %p38
      %p41 = scmp.ne.s32.totalorder %s26, %s40
      %p42 = scmp.eq.s32.totalorder %s21, 0
      %p43 = por %p41, %p42
      %s44 = ssub.s32 %s15, %s22
      %p45 = scmp.eq.s32.totalorder %s44, 0
      %s47 = sadd.s32 %s46, 1
      %s48 = scalar_select %p45, %s46, %s47
      %p51 = pneg %p45
      %p52 = scmp.eq.s32.totalorder %s15, 1
      %p53 = por %p51, %p52
      %p54 = scmp.ne.s32.totalorder %s46, %s49
      %p55 = scmp.eq.s32.totalorder %s15, 0
      %p56 = por %p54, %p55
      %p57 = scmp.ne.s32.totalorder %s46, %s49
      %p58 = scmp.eq.s32.totalorder %s20, 1
      %p59 = por %p57, %p58
      %p60 = scmp.ne.s32.totalorder %s49, %s50
      %p61 = scmp.eq.s32.totalorder %s20, 0
      %p62 = por %p60, %p61
      %p63 = scmp.ne.s32.totalorder %s49, %s50
      %p64 = scmp.eq.s32.totalorder %s21, 1
      %p65 = por %p63, %p64
      %p67 = scmp.ne.s32.totalorder %s50, %s66
      %p68 = scmp.eq.s32.totalorder %s21, 0
      %p69 = por %p67, %p68
      %s70 = ssub.s32 %s15, %s22
      %p71 = scmp.eq.s32.totalorder %s70, 0
      %s73 = sadd.s32 %s72, 1
      %s74 = scalar_select %p71, %s72, %s73
      %p77 = pneg %p71
      %p78 = scmp.eq.s32.totalorder %s15, 1
      %p79 = por %p77, %p78
      %p80 = scmp.ne.s32.totalorder %s72, %s75
      %p81 = scmp.eq.s32.totalorder %s15, 0
      %p82 = por %p80, %p81
      %p83 = scmp.ne.s32.totalorder %s72, %s75
      %p84 = scmp.eq.s32.totalorder %s20, 1
      %p85 = por %p83, %p84
      %p86 = scmp.ne.s32.totalorder %s75, %s76
      %p87 = scmp.eq.s32.totalorder %s20, 0
      %p88 = por %p86, %p87
      %p89 = scmp.ne.s32.totalorder %s75, %s76
      %p90 = scmp.eq.s32.totalorder %s21, 1
      %p91 = por %p89, %p90
      %p93 = scmp.ne.s32.totalorder %s76, %s92
      %p94 = scmp.eq.s32.totalorder %s21, 0
      %p95 = por %p93, %p94
      %p96 = scmp.le.s32.totalorder 1, %s15
      %p97 = scmp.lt.s32.totalorder %s15, 3
      %p98 = pnand %p96, %p97
      %p99 = pneg %p98
      // Predicated region
      $region9: #{tpu_custom_call.1} parent=5 // pred_check
        _
      $region10: #{tpu_custom_call.1} parent=5 // pred_check_branch
        %101 = sbr.rel (%p98) target = $region12
      $region11: #{tpu_custom_call.1} parent=5 // pred_region
        %s102 = ssub.s32 %s15, 1
        // Predicated region
        $region13: #{tpu_custom_call.1} parent=11 // pred_check
          %p103 = pneg %p36
        $region14: #{tpu_custom_call.1} parent=11 // pred_check_branch
          %105 = sbr.rel (%p103) target = $region16
        $region15: #{tpu_custom_call.1} parent=11 // pred_region
          %s107 = ssub.s32 16, 16
          %108 = vsyncadd [#allocation5], %s107
          %111 = dma.hbm_to_smem %s0, 16, [#allocation2], [#allocation5]
        $region16: #{tpu_custom_call.1} parent=11 // pred_fallthru
          _
      $region12: #{tpu_custom_call.1} parent=5 // pred_fallthru
        _
      %p112 = scmp.lt.s32.totalorder %s15, 2
      // Predicated region
      $region17: #{tpu_custom_call.1} parent=5 // pred_check
        %p113 = pneg %p112
      $region18: #{tpu_custom_call.1} parent=5 // pred_check_branch
        %115 = sbr.rel (%p113) target = $region20
      $region19: #{tpu_custom_call.1} parent=5 // pred_region
        // Predicated region
        $region21: #{tpu_custom_call.1} parent=19 // pred_check
          %p116 = pneg %p56
        $region22: #{tpu_custom_call.1} parent=19 // pred_check_branch
          %118 = sbr.rel (%p116) target = $region24
        $region23: #{tpu_custom_call.1} parent=19 // pred_region
          %s119 = sand.u32 %s46, 1
          %s120 = scalar_lea.sflag [#allocation3], %s119
          %s121 = sand.u32 %s46, 1
          %s122 = smul.addr %s121, 256
          %s123 = scalar_lea.vmem [#allocation6], %s122
          %s124 = smul.u32 32, %s15
          %s126 = ssub.s32 4096, 4096
          %127 = vsyncadd %s120, %s126
          %s128 = smul.addr %s124, 128
          %s129 = scalar_lea.hbm %s1, %s128
          %s130 = sshll.u32 %s123, 4
          %s131 = int_to_ptr.vmem [resolvable:$true] %s130
          %136 = dma.hbm_to_vmem [thread:$0]  %s129, 4096, %s131, %s120, 128, 128, 8
        $region24: #{tpu_custom_call.1} parent=19 // pred_fallthru
          _
      $region20: #{tpu_custom_call.1} parent=5 // pred_fallthru
        _
      %p137 = scmp.le.s32.totalorder 1, %s15
      %p138 = scmp.lt.s32.totalorder %s15, 3
      %p139 = pnand %p137, %p138
      %p140 = pneg %p139
      // Predicated region
      $region25: #{tpu_custom_call.1} parent=5 // pred_check
        _
      $region26: #{tpu_custom_call.1} parent=5 // pred_check_branch
        %142 = sbr.rel (%p139) target = $region28
      $region27: #{tpu_custom_call.1} parent=5 // pred_region
        %s143 = ssub.s32 %s15, 1
        // Predicated region
        $region29: #{tpu_custom_call.1} parent=27 // pred_check
          %p144 = pneg %p36
        $region30: #{tpu_custom_call.1} parent=27 // pred_check_branch
          %146 = sbr.rel (%p144) target = $region32
        $region31: #{tpu_custom_call.1} parent=27 // pred_region
          %147 = dma.done [#allocation5], 16
        $region32: #{tpu_custom_call.1} parent=27 // pred_fallthru
          _
        %s148 = sand.u32 %s49, 1
        %s149 = scalar_lea.sflag [#allocation3], %s148
        %s150 = sand.u32 %s49, 1
        %s151 = smul.addr %s150, 256
        %s152 = scalar_lea.vmem [#allocation6], %s151
        // Predicated region
        $region33: #{tpu_custom_call.1} parent=27 // pred_check
          %p153 = pneg %p62
        $region34: #{tpu_custom_call.1} parent=27 // pred_check_branch
          %155 = sbr.rel (%p153) target = $region36
        $region35: #{tpu_custom_call.1} parent=27 // pred_region
          %156 = dma.done %s149, 4096
        $region36: #{tpu_custom_call.1} parent=27 // pred_fallthru
          _
        %157 = sfence
        %p158 = pneg %p36
        %p159 = pneg %p33
        %s160 = sand.u32 %s49, 1
        %s161 = scalar_lea.sflag [#allocation3], %s160
        %s162 = sand.u32 %s49, 1
        %s163 = smul.addr %s162, 256
        %s164 = scalar_lea.vmem [#allocation6], %s163
        %p165 = pneg %p62
        %p166 = pneg %p59
        %p167 = pneg %p88
        %p168 = pneg %p85
        %s169 = sand.u32 %s75, 1
        %s170 = scalar_lea.sflag [#allocation4], %s169
        %s171 = sand.u32 %s75, 1
        %s172 = smul.addr %s171, 256
        %s173 = scalar_lea.vmem [#allocation7], %s172
        %s174 = smul.u32 32, %s20
        %s175 = smul.u32 32, %s20
        %s176 = sld [smem:[#allocation2]]
        %s177 = sld [smem:[#allocation2 + $0x1]]
        %v178 = vld [vmem:[%s152] sm:$0xff]
        %v179 = vld [vmem:[%s152 + $0x8] sm:$0xff]
        %v180 = vld [vmem:[%s152 + $0x10] sm:$0xff]
        %v181 = vld [vmem:[%s152 + $0x18] sm:$0xff]
        %v182 = vld [vmem:[%s152 + $0x20] sm:$0xff]
        %v183 = vld [vmem:[%s152 + $0x28] sm:$0xff]
        %v184 = vld [vmem:[%s152 + $0x30] sm:$0xff]
        %v185 = vld [vmem:[%s152 + $0x38] sm:$0xff]
        %v186 = vld [vmem:[%s152 + $0x40] sm:$0xff]
        %v187 = vld [vmem:[%s152 + $0x48] sm:$0xff]
        %v188 = vld [vmem:[%s152 + $0x50] sm:$0xff]
        %v189 = vld [vmem:[%s152 + $0x58] sm:$0xff]
        %v190 = vld [vmem:[%s152 + $0x60] sm:$0xff]
        %v191 = vld [vmem:[%s152 + $0x68] sm:$0xff]
        %v192 = vld [vmem:[%s152 + $0x70] sm:$0xff]
        %v193 = vld [vmem:[%s152 + $0x78] sm:$0xff]
        %v194 = vld [vmem:[%s152 + $0x80] sm:$0xff]
        %v195 = vld [vmem:[%s152 + $0x88] sm:$0xff]
        %v196 = vld [vmem:[%s152 + $0x90] sm:$0xff]
        %v197 = vld [vmem:[%s152 + $0x98] sm:$0xff]
        %v198 = vld [vmem:[%s152 + $0xa0] sm:$0xff]
        %v199 = vld [vmem:[%s152 + $0xa8] sm:$0xff]
        %v200 = vld [vmem:[%s152 + $0xb0] sm:$0xff]
        %v201 = vld [vmem:[%s152 + $0xb8] sm:$0xff]
        %v202 = vld [vmem:[%s152 + $0xc0] sm:$0xff]
        %v203 = vld [vmem:[%s152 + $0xc8] sm:$0xff]
        %v204 = vld [vmem:[%s152 + $0xd0] sm:$0xff]
        %v205 = vld [vmem:[%s152 + $0xd8] sm:$0xff]
        %v206 = vld [vmem:[%s152 + $0xe0] sm:$0xff]
        %v207 = vld [vmem:[%s152 + $0xe8] sm:$0xff]
        %v208 = vld [vmem:[%s152 + $0xf0] sm:$0xff]
        %v209 = vld [vmem:[%s152 + $0xf8] sm:$0xff]
        %v210 = vstv %s176
        %v211 = vmul.f32 %v178, %v210
        %v212 = vmul.f32 %v179, %v210
        %v213 = vmul.f32 %v180, %v210
        %v214 = vmul.f32 %v181, %v210
        %v215 = vmul.f32 %v182, %v210
        %v216 = vmul.f32 %v183, %v210
        %v217 = vmul.f32 %v184, %v210
        %v218 = vmul.f32 %v185, %v210
        %v219 = vmul.f32 %v186, %v210
        %v220 = vmul.f32 %v187, %v210
        %v221 = vmul.f32 %v188, %v210
        %v222 = vmul.f32 %v189, %v210
        %v223 = vmul.f32 %v190, %v210
        %v224 = vmul.f32 %v191, %v210
        %v225 = vmul.f32 %v192, %v210
        %v226 = vmul.f32 %v193, %v210
        %v227 = vmul.f32 %v194, %v210
        %v228 = vmul.f32 %v195, %v210
        %v229 = vmul.f32 %v196, %v210
        %v230 = vmul.f32 %v197, %v210
        %v231 = vmul.f32 %v198, %v210
        %v232 = vmul.f32 %v199, %v210
        %v233 = vmul.f32 %v200, %v210
        %v234 = vmul.f32 %v201, %v210
        %v235 = vmul.f32 %v202, %v210
        %v236 = vmul.f32 %v203, %v210
        %v237 = vmul.f32 %v204, %v210
        %v238 = vmul.f32 %v205, %v210
        %v239 = vmul.f32 %v206, %v210
        %v240 = vmul.f32 %v207, %v210
        %v241 = vmul.f32 %v208, %v210
        %v242 = vmul.f32 %v209, %v210
        %v243 = vstv %s177
        %v244 = vadd.f32 %v211, %v243
        %v245 = vadd.f32 %v212, %v243
        %v246 = vadd.f32 %v213, %v243
        %v247 = vadd.f32 %v214, %v243
        %v248 = vadd.f32 %v215, %v243
        %v249 = vadd.f32 %v216, %v243
        %v250 = vadd.f32 %v217, %v243
        %v251 = vadd.f32 %v218, %v243
        %v252 = vadd.f32 %v219, %v243
        %v253 = vadd.f32 %v220, %v243
        %v254 = vadd.f32 %v221, %v243
        %v255 = vadd.f32 %v222, %v243
        %v256 = vadd.f32 %v223, %v243
        %v257 = vadd.f32 %v224, %v243
        %v258 = vadd.f32 %v225, %v243
        %v259 = vadd.f32 %v226, %v243
        %v260 = vadd.f32 %v227, %v243
        %v261 = vadd.f32 %v228, %v243
        %v262 = vadd.f32 %v229, %v243
        %v263 = vadd.f32 %v230, %v243
        %v264 = vadd.f32 %v231, %v243
        %v265 = vadd.f32 %v232, %v243
        %v266 = vadd.f32 %v233, %v243
        %v267 = vadd.f32 %v234, %v243
        %v268 = vadd.f32 %v235, %v243
        %v269 = vadd.f32 %v236, %v243
        %v270 = vadd.f32 %v237, %v243
        %v271 = vadd.f32 %v238, %v243
        %v272 = vadd.f32 %v239, %v243
        %v273 = vadd.f32 %v240, %v243
        %v274 = vadd.f32 %v241, %v243
        %v275 = vadd.f32 %v242, %v243
        %276 = vst [vmem:[%s173] sm:$0xff] %v244
        %277 = vst [vmem:[%s173 + $0x8] sm:$0xff] %v245
        %278 = vst [vmem:[%s173 + $0x10] sm:$0xff] %v246
        %279 = vst [vmem:[%s173 + $0x18] sm:$0xff] %v247
        %280 = vst [vmem:[%s173 + $0x20] sm:$0xff] %v248
        %281 = vst [vmem:[%s173 + $0x28] sm:$0xff] %v249
        %282 = vst [vmem:[%s173 + $0x30] sm:$0xff] %v250
        %283 = vst [vmem:[%s173 + $0x38] sm:$0xff] %v251
        %284 = vst [vmem:[%s173 + $0x40] sm:$0xff] %v252
        %285 = vst [vmem:[%s173 + $0x48] sm:$0xff] %v253
        %286 = vst [vmem:[%s173 + $0x50] sm:$0xff] %v254
        %287 = vst [vmem:[%s173 + $0x58] sm:$0xff] %v255
        %288 = vst [vmem:[%s173 + $0x60] sm:$0xff] %v256
        %289 = vst [vmem:[%s173 + $0x68] sm:$0xff] %v257
        %290 = vst [vmem:[%s173 + $0x70] sm:$0xff] %v258
        %291 = vst [vmem:[%s173 + $0x78] sm:$0xff] %v259
        %292 = vst [vmem:[%s173 + $0x80] sm:$0xff] %v260
        %293 = vst [vmem:[%s173 + $0x88] sm:$0xff] %v261
        %294 = vst [vmem:[%s173 + $0x90] sm:$0xff] %v262
        %295 = vst [vmem:[%s173 + $0x98] sm:$0xff] %v263
        %296 = vst [vmem:[%s173 + $0xa0] sm:$0xff] %v264
        %297 = vst [vmem:[%s173 + $0xa8] sm:$0xff] %v265
        %298 = vst [vmem:[%s173 + $0xb0] sm:$0xff] %v266
        %299 = vst [vmem:[%s173 + $0xb8] sm:$0xff] %v267
        %300 = vst [vmem:[%s173 + $0xc0] sm:$0xff] %v268
        %301 = vst [vmem:[%s173 + $0xc8] sm:$0xff] %v269
        %302 = vst [vmem:[%s173 + $0xd0] sm:$0xff] %v270
        %303 = vst [vmem:[%s173 + $0xd8] sm:$0xff] %v271
        %304 = vst [vmem:[%s173 + $0xe0] sm:$0xff] %v272
        %305 = vst [vmem:[%s173 + $0xe8] sm:$0xff] %v273
        %306 = vst [vmem:[%s173 + $0xf0] sm:$0xff] %v274
        %307 = vst [vmem:[%s173 + $0xf8] sm:$0xff] %v275
        %s308 = sand.u32 %s75, 1
        %s309 = scalar_lea.sflag [#allocation4], %s308
        %s310 = sand.u32 %s75, 1
        %s311 = smul.addr %s310, 256
        %s312 = scalar_lea.vmem [#allocation7], %s311
        // Predicated region
        $region37: #{tpu_custom_call.1} parent=27 // pred_check
          %p313 = pneg %p85
        $region38: #{tpu_custom_call.1} parent=27 // pred_check_branch
          %315 = sbr.rel (%p313) target = $region40
        $region39: #{tpu_custom_call.1} parent=27 // pred_region
          %s316 = smul.u32 32, %s20
          %s318 = ssub.s32 4096, 4096
          %319 = vsyncadd %s309, %s318
          %s320 = smul.addr %s316, 128
          %s321 = scalar_lea.hbm %s2, %s320
          %s322 = sshll.u32 %s312, 4
          %s323 = int_to_ptr.vmem [resolvable:$true] %s322
          %328 = dma.vmem_to_hbm [thread:$0]  %s323, 4096, %s321, %s309, 128, 128, 8
        $region40: #{tpu_custom_call.1} parent=27 // pred_fallthru
          _
      $region28: #{tpu_custom_call.1} parent=5 // pred_fallthru
        _
      %p329 = scmp.le.s32.totalorder 2, %s15
      // Predicated region
      $region41: #{tpu_custom_call.1} parent=5 // pred_check
        %p330 = pneg %p329
      $region42: #{tpu_custom_call.1} parent=5 // pred_check_branch
        %332 = sbr.rel (%p330) target = $region44
      $region43: #{tpu_custom_call.1} parent=5 // pred_region
        %s333 = ssub.s32 %s15, 2
        // Predicated region
        $region45: #{tpu_custom_call.1} parent=43 // pred_check
          %p334 = pneg %p91
        $region46: #{tpu_custom_call.1} parent=43 // pred_check_branch
          %336 = sbr.rel (%p334) target = $region48
        $region47: #{tpu_custom_call.1} parent=43 // pred_region
          %s337 = sand.u32 %s76, 1
          %s338 = scalar_lea.sflag [#allocation4], %s337
          %s339 = sand.u32 %s76, 1
          %s340 = smul.addr %s339, 256
          %s341 = scalar_lea.vmem [#allocation7], %s340
          %342 = dma.done %s338, 4096
        $region48: #{tpu_custom_call.1} parent=43 // pred_fallthru
          _
      $region44: #{tpu_custom_call.1} parent=5 // pred_fallthru
        _
    $region6: #{tpu_custom_call.1} parent=1 // loop_footer
      %s19 = sadd.s32 1, %s15
    $region7: #{tpu_custom_call.1} parent=1 // loop_footer_branch
      %14 = sbr.rel target = $region3
    $region8: #{tpu_custom_call.1} parent=1 // loop_exit
      _
    %343 = vsyncpa [#allocation3], 1
    %s344 = scalar_lea.sflag [#allocation3], 1
    %345 = vsyncpa %s344, 1
    %346 = vsyncpa [#allocation4], 1
    %s347 = scalar_lea.sflag [#allocation4], 1
    %348 = vsyncpa %s347, 1
    %349 = vsyncpa [#allocation5], 1
    %s350 = scalar_lea.sflag [#allocation5], 1
    %351 = vsyncpa %s350, 1

</llo_original>
